<compile_context>
chip_gen: v5e
topology: v5e:2x2
jax: 0.10.0
libtpu: 0.0.40
codegen_flags: <defaults>
</compile_context>

<pallas_src>
import jax
import jax.numpy as jnp
from jax.experimental import pallas as pl
from jax.experimental.pallas import tpu as pltpu

IN_FEATURES = 8
OUT_FEATURES = 8   # TODO(synk): the source module declares nn.Linear(8, 16); with
                   # out=16 the subtraction v7 - x2 is (1,16)-(1,8), which PyTorch
                   # itself rejects, so the runnable kernel uses
                   # out_features == in_features == 8.


def fused_linear_sub_kernel(x_ref, w_ref, b_ref, o_ref):
    """o = x @ W_eff + b  (W_eff = W.T - I already folds the residual '- x').

    One MXU matmul (f32 accumulate) plus one exact-shape VPU add; b is
    pre-shaped (B, OUT) == o.shape so there is no in-kernel broadcast.
    """
    o_ref[...] = (
        jnp.dot(x_ref[...], w_ref[...], preferred_element_type=jnp.float32)
        + b_ref[...]
    ).astype(o_ref.dtype)


def prepare_params(w, b, batch):
    """One-time parameter folding (outside the per-call path).

    w: (OUT, IN) in torch.nn.Linear layout; b: (OUT,).
    Returns:
      w_eff : (IN, OUT) = W.T - I   (residual subtract folded in)
      b_full: (batch, OUT)          (bias pre-broadcast to the output shape)
    """
    OUT, IN = w.shape
    assert b.shape == (OUT,)
    assert OUT == IN, "residual subtraction requires out_features == in_features"

    w_eff = jnp.asarray(w, jnp.float32).T - jnp.eye(IN, OUT, dtype=jnp.float32)
    b_full = jnp.tile(jnp.asarray(b, jnp.float32)[None, :], (batch, 1))
    return w_eff, b_full


def fused_linear_sub(x, w_eff, b_full):
    """x: (B, IN) f32. Returns (B, OUT) = x @ W.T + b - x, fused in one kernel."""
    B, IN = x.shape
    K, N = w_eff.shape
    assert IN == K and b_full.shape == (B, N)

    flops = 2 * B * K * N
    bytes_accessed = 4 * (B * K + K * N + B * N + B * N)  # x, W_eff, b, out (f32)

    return pl.pallas_call(
        fused_linear_sub_kernel,
        out_shape=jax.ShapeDtypeStruct((B, N), jnp.float32),
        in_specs=[
            pl.BlockSpec(memory_space=pltpu.MemorySpace.VMEM),  # x      (B, 8)
            pl.BlockSpec(memory_space=pltpu.MemorySpace.VMEM),  # W_eff  (8, 8)
            pl.BlockSpec(memory_space=pltpu.MemorySpace.VMEM),  # b      (B, 8)
        ],
        out_specs=pl.BlockSpec(memory_space=pltpu.MemorySpace.VMEM),
        cost_estimate=pl.CostEstimate(
            flops=flops, bytes_accessed=bytes_accessed, transcendentals=0),
    )(x, w_eff, b_full)


def init_linear_params(key, in_features, out_features):
    """Deterministic torch.nn.Linear-style init: U(-1/sqrt(in), 1/sqrt(in))."""
    kw, kb = jax.random.split(key)
    bound = 1.0 / (in_features ** 0.5)
    w = jax.random.uniform(kw, (out_features, in_features), jnp.float32,
                           minval=-bound, maxval=bound)
    b = jax.random.uniform(kb, (out_features,), jnp.float32,
                           minval=-bound, maxval=bound)
    return w, b


if __name__ == "__main__":
    key = jax.random.PRNGKey(0)
    k_x, k_p = jax.random.split(key)

    # x2 = torch.randn(1, 8)
    x2 = jax.random.normal(k_x, (1, IN_FEATURES), jnp.float32)
    w, b = init_linear_params(k_p, IN_FEATURES, OUT_FEATURES)

    # One-time parameter folding (W_eff = W.T - I, bias pre-shaped to output).
    w_eff, b_full = prepare_params(w, b, batch=x2.shape[0])

    out = fused_linear_sub(x2, w_eff, b_full)
    out = jax.block_until_ready(out)

    # Pure-JAX reference of the same (repaired) forward: linear + residual sub.
    ref = (x2 @ w.T + b[None, :]) - x2
    assert out.shape == (1, OUT_FEATURES)
    assert jnp.allclose(out, ref, atol=1e-5, rtol=1e-5), "mismatch vs reference"

    print("KERNEL_OK")
</pallas_src>

<mosaic_0001>
module attributes {stable_mosaic.version = 11 : i64} {
  func.func @fused_linear_sub_kernel(%arg0: memref<1x8xf32, #tpu.memory_space<vmem>>, %arg1: memref<8x8xf32, #tpu.memory_space<vmem>>, %arg2: memref<1x8xf32, #tpu.memory_space<vmem>>, %arg3: memref<1x8xf32, #tpu.memory_space<vmem>>) attributes {dimension_semantics = [], scalar_prefetch = 0 : i64, scratch_operands = 0 : i64, tpu.core_type = #tpu.core_type<tc>} {
    %c0 = arith.constant 0 : index
    %c0_0 = arith.constant 0 : index
    %0 = vector.load %arg0[%c0, %c0_0] : memref<1x8xf32, #tpu.memory_space<vmem>>, vector<1x8xf32>
    %c0_1 = arith.constant 0 : index
    %c0_2 = arith.constant 0 : index
    %1 = vector.load %arg1[%c0_1, %c0_2] : memref<8x8xf32, #tpu.memory_space<vmem>>, vector<8x8xf32>
    %cst = arith.constant dense<0.000000e+00> : vector<1x8xf32>
    %2 = tpu.matmul %0, %1, %cst {dimension_numbers = #tpu.dot_dimension_numbers<[1], [0], [0], [1], [0, 0, 1, 1], [], []>} : vector<1x8xf32>, vector<8x8xf32>, vector<1x8xf32> -> vector<1x8xf32>
    %c0_3 = arith.constant 0 : index
    %c0_4 = arith.constant 0 : index
    %3 = vector.load %arg2[%c0_3, %c0_4] : memref<1x8xf32, #tpu.memory_space<vmem>>, vector<1x8xf32>
    %4 = arith.addf %2, %3 : vector<1x8xf32>
    %c0_5 = arith.constant 0 : index
    %c0_6 = arith.constant 0 : index
    %5 = vector.load %arg3[%c0_5, %c0_6] : memref<1x8xf32, #tpu.memory_space<vmem>>, vector<1x8xf32>
    tpu.vector_store %arg3[%c0_5, %c0_6], %4 {strides = array<i32>} : memref<1x8xf32, #tpu.memory_space<vmem>>, vector<1x8xf32>,
    return
  }
}

</mosaic_0001>

<llo_original>
// kernel: tpu_custom_call.1
$region0: #{tpu_custom_call.1}
  #allocation0 [shape = 'u32[]', space=smem, size = 0x4, offset = 0x4, fixed_abs, tag = 'smem constant byte address 0x4 - core index']
  #allocation1 [shape = 'u32[72,128]{1,0:T(1,128)}', space=vmem, size = 0x9000, scoped, tag = 'internal scratch']
  %s0 = inlined_call_operand.hbm [shape: f32[1,8], index: 0, kind: input, shape index: {}]
  %s1 = inlined_call_operand.hbm [shape: f32[8,8], index: 1, kind: input, shape index: {}]
  %s2 = inlined_call_operand.vmem [shape: f32[1,8], index: 2, kind: input, shape index: {}]
  %s3 = inlined_call_operand.hbm [shape: f32[1,8], index: 3, kind: output, shape index: {}]
  %s4 = sld [smem:[#allocation0]]
  $region30: #{tpu_custom_call.1} parent=0
    _
  %s6 = ssub.s32 1, %s4
  %s7 = scalar_select 0, %s6, %s4
  $region1: #{tpu_custom_call.1} parent=0
    #allocation2 [shape = 'u8[512]{0}', space=vmem, size = 0x400, scoped, tag = 'input window, operand 0, single buffered']
    #allocation3 [shape = 's32[1]{0}', space=sflag, size = 0x4, scoped, tag = 'scoped memory for tpu_custom_call.1']
    #allocation4 [shape = 's32[1]{0}', space=sflag, size = 0x4, scoped, tag = 'scoped memory for tpu_custom_call.1']
    #allocation5 [shape = 'u8[4096]{0}', space=vmem, size = 0x1000, scoped, tag = 'input window, operand 1, single buffered']
    #allocation6 [shape = 's32[1]{0}', space=sflag, size = 0x4, scoped, tag = 'scoped memory for tpu_custom_call.1']
    #allocation7 [shape = 'u8[512]{0}', space=vmem, size = 0x400, scoped, tag = 'output window, operand 0, single buffered']
    %8 = vsyncpa [#allocation3], 0
    %9 = vsyncpa [#allocation6], 0
    %10 = vsyncpa [#allocation4], 0
    // Predicated region
    $region2: #{tpu_custom_call.1} parent=1 // pred_check
      _
    $region3: #{tpu_custom_call.1} parent=1 // pred_check_branch
      %12 = sbr.rel (0) target = $region5
    $region4: #{tpu_custom_call.1} parent=1 // pred_region
      %14 = vsyncadd [#allocation3], 0
      %s16 = sshll.u32 %s0, 4
      %s17 = int_to_ptr.hbm [resolvable:$true] %s16
      %s18 = sshll.u32 [#allocation2], 4
      %s19 = int_to_ptr.vmem [resolvable:$true] %s18
      %21 = dma.hbm_to_vmem [thread:$0]  %s17, 16, %s19, [#allocation3]
    $region5: #{tpu_custom_call.1} parent=1 // pred_fallthru
      _
    // Predicated region
    $region6: #{tpu_custom_call.1} parent=1 // pred_check
      _
    $region7: #{tpu_custom_call.1} parent=1 // pred_check_branch
      %23 = sbr.rel (0) target = $region9
    $region8: #{tpu_custom_call.1} parent=1 // pred_region
      %25 = vsyncadd [#allocation6], 0
      %s27 = sshll.u32 %s1, 4
      %s28 = int_to_ptr.hbm [resolvable:$true] %s27
      %s29 = sshll.u32 [#allocation5], 4
      %s30 = int_to_ptr.vmem [resolvable:$true] %s29
      %32 = dma.hbm_to_vmem [thread:$0]  %s28, 128, %s30, [#allocation6]
    $region9: #{tpu_custom_call.1} parent=1 // pred_fallthru
      _
    // Predicated region
    $region10: #{tpu_custom_call.1} parent=1 // pred_check
      _
    $region11: #{tpu_custom_call.1} parent=1 // pred_check_branch
      %34 = sbr.rel (0) target = $region13
    $region12: #{tpu_custom_call.1} parent=1 // pred_region
      _
    $region13: #{tpu_custom_call.1} parent=1 // pred_fallthru
      _
    // Predicated region
    $region14: #{tpu_custom_call.1} parent=1 // pred_check
      _
    $region15: #{tpu_custom_call.1} parent=1 // pred_check_branch
      %36 = sbr.rel (0) target = $region17
    $region16: #{tpu_custom_call.1} parent=1 // pred_region
      %38 = dma.done [#allocation3], 16
    $region17: #{tpu_custom_call.1} parent=1 // pred_fallthru
      _
    // Predicated region
    $region18: #{tpu_custom_call.1} parent=1 // pred_check
      _
    $region19: #{tpu_custom_call.1} parent=1 // pred_check_branch
      %40 = sbr.rel (0) target = $region21
    $region20: #{tpu_custom_call.1} parent=1 // pred_region
      %42 = dma.done [#allocation6], 128
    $region21: #{tpu_custom_call.1} parent=1 // pred_fallthru
      _
    %v43 = vld [vmem:[#allocation2] sm:$0x1]
    %v44 = vld [vmem:[#allocation5] sm:$0xff]
    %v45 = vld [vmem:[%s2] sm:$0x1]
    %vm46 = vcmask 64512
    %v48 = vsel %vm46, %v43, 0
    %50 = vmatpush.msra.mxu0 0.0
    %51 = vmatpush.msra.mxu0 0.0
    %52 = vmatpush.msra.mxu0 0.0
    %53 = vmatpush.msra.mxu0 0.0
    %54 = vmatpush.msra.mxu0 0.0
    %55 = vmatpush.msra.mxu0 0.0
    %56 = vmatpush.msra.mxu0 0.0
    %57 = vmatpush.msra.mxu0 0.0
    %58 = vmatpush.msra.mxu0 0.0
    %59 = vmatpush.msra.mxu0 0.0
    %60 = vmatpush.msra.mxu0 0.0
    %61 = vmatpush.msra.mxu0 0.0
    %62 = vmatpush.msra.mxu0 0.0
    %63 = vmatpush.msra.mxu0 0.0
    %64 = vmatpush.msra.mxu0 0.0
    %65 = vmatpush.msra.mxu0 %v44
    %66 = vmatmul.f32.gmra.mxu0 %v48
    %v67 = vpop.f32.mrf.mxu0
    %v68 = vadd.f32 %v45, %v67
    %69 = vdwg.mxu0
    %vm70 = vcmask 57344
    %71 = vst.msk [vmem:[#allocation7] sm:$0x1] %vm70, %v68
    // Predicated region
    $region22: #{tpu_custom_call.1} parent=1 // pred_check
      _
    $region23: #{tpu_custom_call.1} parent=1 // pred_check_branch
      %73 = sbr.rel (0) target = $region25
    $region24: #{tpu_custom_call.1} parent=1 // pred_region
      %75 = vsyncadd [#allocation4], 0
      %s77 = sshll.u32 [#allocation7], 4
      %s78 = int_to_ptr.vmem [resolvable:$true] %s77
      %s79 = sshll.u32 %s3, 4
      %s80 = int_to_ptr.hbm [resolvable:$true] %s79
      %82 = dma.vmem_to_hbm [thread:$0]  %s78, 16, %s80, [#allocation4]
    $region25: #{tpu_custom_call.1} parent=1 // pred_fallthru
      _
    // Predicated region
    $region26: #{tpu_custom_call.1} parent=1 // pred_check
      _
    $region27: #{tpu_custom_call.1} parent=1 // pred_check_branch
      %84 = sbr.rel (0) target = $region29
    $region28: #{tpu_custom_call.1} parent=1 // pred_region
      %86 = dma.done [#allocation4], 16
    $region29: #{tpu_custom_call.1} parent=1 // pred_fallthru
      _
    %87 = vsyncpa [#allocation3], 1
    %88 = vsyncpa [#allocation6], 1
    %89 = vsyncpa [#allocation4], 1

</llo_original>
